<compile_context>
chip_gen: v7x
topology: tpu7x:2x2x1
jax: 0.10.0
libtpu: 0.0.40
codegen_flags: <defaults>
</compile_context>

<pallas_src>
import functools

import jax
import jax.numpy as jnp
from jax.experimental import pallas as pl
from jax.experimental.pallas import tpu as pltpu


_LANE = 128
# Below this many activation bytes, plain XLA dot beats the kernel launch.
_PALLAS_MIN_BYTES = 256 * 1024


def _detect_vmem_limit_bytes() -> int:
    """Per-generation scoped-VMEM limit: 3/4 of physical, capped at 64 MiB.

    v5e/v6e (128 MiB physical) -> 64 MiB; v7x (64 MiB per-TC) -> 48 MiB.
    Falls back to 48 MiB if the hardware query is unavailable.
    """
    phys = 64 << 20
    try:
        info = pltpu.get_tpu_info()
        phys = int(getattr(info, "vmem_capacity_bytes", phys)) or phys
    except Exception:
        pass
    return min((phys * 3) // 4, 64 << 20)


_VMEM_LIMIT_BYTES = _detect_vmem_limit_bytes()


def _packing_geometry(n: int) -> tuple[int, int]:
    """Return (g, n_pad): fold g rows into the lane axis, pad N -> n_pad lanes.

    n_pad is the smallest power of two >= n (which divides 128) when n < 128,
    otherwise n rounded up to a multiple of 128.  g * n_pad is then always a
    multiple of 128, so every output store is a full unmasked vst.
    """
    if n >= _LANE:
        return 1, pl.cdiv(n, _LANE) * _LANE
    n_pad = 1
    while n_pad < n:
        n_pad *= 2
    return _LANE // n_pad, n_pad


def _lora_m_kernel(x_ref, m_ref, o_ref):
    """o = x @ M for one (module, row-tile) grid step. Pure stream-through."""
    o_ref[...] = jnp.dot(
        x_ref[...], m_ref[...], preferred_element_type=jnp.float32
    ).astype(o_ref.dtype)


@functools.partial(
    jax.jit,
    static_argnames=("n_out", "group", "compute_dtype", "out_dtype"),
)
def lora_m_matmul_fused(x3d, m_exp3d, *, n_out, group, compute_dtype, out_dtype):
    """Fused LoRA-M matmul over all target modules.

    x3d:     [T, R, K]        activations (T = number of target modules)
    m_exp3d: [T, g*K, g*n_pad] pre-expanded block-diagonal lora_M (compute dtype)
    returns  [T, R, n_out]    = x3d @ lora_M (per module), one pallas_call.
    """
    compute_dtype = jnp.dtype(compute_dtype)
    out_dtype = jnp.dtype(out_dtype)
    T, R, K = x3d.shape
    Tm, gk, gn = m_exp3d.shape
    assert T == Tm and gk == group * K, (x3d.shape, m_exp3d.shape, group)
    n_pad = gn // group
    x_item = compute_dtype.itemsize
    o_item = out_dtype.itemsize
    # bf16 tiles pack 16 rows per sublane group; f32 needs 8.
    sub = 16 if (x_item < 4 or o_item < 4) else 8

    x = x3d.astype(compute_dtype)
    m = m_exp3d.astype(compute_dtype)

    # ---- Row-tile size purely from the per-generation VMEM budget ----------
    group_bytes = gk * x_item + gn * o_item          # one packed row (x + out)
    m_bytes = gk * gn * x_item                       # one module's expanded M
    # Double-buffered in-flight: 2*(x_tile + out_tile) + 2*M  <=  ~limit/2.
    budget = max(2 * sub * group_bytes, _VMEM_LIMIT_BYTES // 2 - 2 * m_bytes)
    max_groups = max(sub, budget // (2 * group_bytes))
    tg = max(sub, (max_groups // sub) * sub)

    # ---- Pad rows, then fold g rows into the lane axis (free reshape) ------
    n_groups = pl.cdiv(R, group)
    if n_groups <= tg:
        tg = n_groups                                # single, full-extent tile
    else:
        n_groups = pl.cdiv(n_groups, tg) * tg
    rp = n_groups * group
    if rp != R:
        x = jnp.pad(x, ((0, 0), (0, rp - R), (0, 0)))
    xp = x.reshape(T, n_groups, gk)                  # byte-identical reshape

    grid = (T, n_groups // tg)
    out = pl.pallas_call(
        _lora_m_kernel,
        out_shape=jax.ShapeDtypeStruct((T, n_groups, gn), out_dtype),
        grid_spec=pltpu.PrefetchScalarGridSpec(
            num_scalar_prefetch=0,
            grid=grid,
            in_specs=[
                pl.BlockSpec((None, tg, gk), lambda t, i: (t, i, 0)),
                pl.BlockSpec((None, gk, gn), lambda t, i: (t, 0, 0)),
            ],
            out_specs=pl.BlockSpec((None, tg, gn), lambda t, i: (t, i, 0)),
        ),
        compiler_params=pltpu.CompilerParams(
            dimension_semantics=("parallel", "parallel"),
            vmem_limit_bytes=_VMEM_LIMIT_BYTES,
        ),
        cost_estimate=pl.CostEstimate(
            flops=2 * T * n_groups * gk * gn,
            transcendentals=0,
            bytes_accessed=(xp.size * x_item + m.size * x_item
                            + T * n_groups * gn * o_item),
        ),
    )(xp, m)

    # Unpack lanes back to rows (byte-identical reshape), drop padding.
    return out.reshape(T, rp, n_pad)[:, :R, :n_out]


class FedLoraMLayer:
    """JAX/Pallas port of FedLoraMLayer.

    lora_M[target_module] has shape (r_v2c, r_c2v) and is initialized to
    zeros (non-trainable), matching the PyTorch module.  The socket channel
    is simulated: `forward` takes a dict of received activations and returns
    a dict of transformed activations ("sent back").
    """

    def __init__(self, r_v2c: int, r_c2v: int, target_modules: list[str],
                 *, param_dtype=jnp.float32, compute_dtype=jnp.bfloat16,
                 out_dtype=None):
        self.r_v2c = r_v2c
        self.r_c2v = r_c2v
        self.target_modules = list(target_modules)
        self.param_dtype = jnp.dtype(param_dtype)
        self.compute_dtype = jnp.dtype(compute_dtype)   # streamed dtype
        self.out_dtype = jnp.dtype(out_dtype) if out_dtype is not None \
            else self.param_dtype
        self.g, self.n_pad = _packing_geometry(r_c2v)
        # Matches the spec: zeros, requires_grad=False.
        self.lora_M = {
            tgt: jnp.zeros((r_v2c, r_c2v), dtype=self.param_dtype)
            for tgt in self.target_modules
        }
        # Frozen weights -> precompute the block-diagonal lane-dense packing
        # once (no per-forward kron/einsum materialization).
        self._lora_M_packed = {
            tgt: self._pack_M(self.lora_M[tgt]) for tgt in self.target_modules
        }

    # --- weight management ---------------------------------------------------
    def _pack_M(self, m: jax.Array) -> jax.Array:
        k, n = m.shape
        m_pad = m if n == self.n_pad else jnp.pad(m, ((0, 0), (0, self.n_pad - n)))
        if self.g > 1:
            eye = jnp.eye(self.g, dtype=m_pad.dtype)
            m_exp = jnp.einsum("ij,kn->ikjn", eye, m_pad).reshape(
                self.g * k, self.g * self.n_pad)
        else:
            m_exp = m_pad
        return m_exp.astype(self.compute_dtype)

    def set_lora_M(self, target_module: str, value) -> None:
        value = jnp.asarray(value, dtype=self.param_dtype)
        assert value.shape == (self.r_v2c, self.r_c2v), value.shape
        self.lora_M[target_module] = value
        self._lora_M_packed[target_module] = self._pack_M(value)

    # --- forward --------------------------------------------------------------
    def forward(self, recv: dict[str, jax.Array], *,
                use_pallas: bool | None = None) -> dict[str, jax.Array]:
        # Flatten each activation to 2-D (x.to(M.dtype) as in the module) and
        # group identical shapes so they can be fused into one pallas_call.
        flat = {}
        groups: dict[tuple, list[str]] = {}
        for tgt in self.target_modules:
            x = recv[tgt]
            lead = x.shape[:-1]
            x2d = x.reshape((-1, x.shape[-1]))
            flat[tgt] = (x2d, lead)
            groups.setdefault(x2d.shape, []).append(tgt)

        sent = {}
        for shape, tgts in groups.items():
            xs = jnp.stack([flat[t][0] for t in tgts])              # [T, R, K]
            if use_pallas is None:
                go_pallas = (
                    xs.size * jnp.dtype(xs.dtype).itemsize >= _PALLAS_MIN_BYTES
                )
            else:
                go_pallas = use_pallas
            if go_pallas:
                ms = jnp.stack([self._lora_M_packed[t] for t in tgts])
                ys = lora_m_matmul_fused(                           # Pallas kernel
                    xs, ms,
                    n_out=self.r_c2v, group=self.g,
                    compute_dtype=self.compute_dtype, out_dtype=self.out_dtype)
            else:
                ms = jnp.stack([self.lora_M[t] for t in tgts])      # [T, K, N]
                ys = jnp.einsum("trk,tkn->trn",
                                xs.astype(self.param_dtype), ms
                                ).astype(self.out_dtype)            # tiny shapes
            for i, t in enumerate(tgts):
                lead = flat[t][1]
                sent[t] = ys[i].reshape(lead + (self.r_c2v,))
        return sent
        # TODO(synk): real socket recv/send (ClientChannel) has no Pallas
        # equivalent; simulated with dict in/out.


if __name__ == "__main__":
    key = jax.random.PRNGKey(0)
    batch, seq = 2, 8
    r_v2c, r_c2v = 32, 16
    target_modules = ["q_proj", "v_proj"]

    layer = FedLoraMLayer(r_v2c, r_c2v, target_modules)

    # The module spec initializes lora_M to zeros; load deterministic
    # non-zero values (as a checkpoint would) so the matmul is verifiable.
    for i, tgt in enumerate(target_modules):
        layer.set_lora_M(tgt, 0.02 * jax.random.normal(
            jax.random.fold_in(key, 100 + i), (r_v2c, r_c2v), dtype=jnp.float32))

    # Simulated activations "received from vender": [batch, seq, r_v2c].
    recv = {
        tgt: jax.random.normal(
            jax.random.fold_in(key, 200 + i), (batch, seq, r_v2c),
            dtype=jnp.float32,
        )
        for i, tgt in enumerate(target_modules)
    }

    # Force the Pallas path for the demo (the auto heuristic would route
    # shapes this tiny to plain jnp.einsum).
    out = layer.forward(recv, use_pallas=True)
    jax.block_until_ready(out)

    # Correctness checks.
    for tgt in target_modules:
        assert out[tgt].shape == (batch, seq, r_c2v), out[tgt].shape
        y = out[tgt].astype(jnp.float32)
        # Exact reference for the bf16-streamed compute path.
        ref_bf16 = jnp.einsum(
            "bsk,kn->bsn",
            recv[tgt].astype(jnp.bfloat16).astype(jnp.float32),
            layer.lora_M[tgt].astype(jnp.bfloat16).astype(jnp.float32),
            precision=jax.lax.Precision.HIGHEST,
        )
        assert jnp.allclose(y, ref_bf16, atol=1e-4, rtol=1e-4), tgt
        # Sanity vs the full-f32 reference (bf16 streaming tradeoff).
        ref_f32 = jnp.einsum(
            "bsk,kn->bsn", recv[tgt], layer.lora_M[tgt],
            precision=jax.lax.Precision.HIGHEST,
        )
        assert jnp.allclose(y, ref_f32, atol=5e-2, rtol=5e-2), tgt

    print("KERNEL_OK")
</pallas_src>

<mosaic_0001>
module attributes {stable_mosaic.version = 11 : i64} {
  func.func @_lora_m_kernel(%arg0: i32, %arg1: i32, %arg2: memref<1x2x256xbf16, #tpu.memory_space<vmem>>, %arg3: memref<1x256x128xbf16, #tpu.memory_space<vmem>>, %arg4: memref<1x2x128xf32, #tpu.memory_space<vmem>>) attributes {dimension_semantics = [#tpu.dimension_semantics<parallel>, #tpu.dimension_semantics<parallel>], iteration_bounds = array<i64: 2, 1>, scalar_prefetch = 0 : i64, scratch_operands = 0 : i64, tpu.core_type = #tpu.core_type<tc>, window_params = [{transform_indices = @transform_0, window_bounds = array<i64: 1, 2, 256>}, {transform_indices = @transform_1, window_bounds = array<i64: 1, 256, 128>}, {transform_indices = @transform_2, window_bounds = array<i64: 1, 2, 128>}]} {
    %c0 = arith.constant 0 : index
    %c0_0 = arith.constant 0 : index
    %c0_1 = arith.constant 0 : index
    %0 = vector.load %arg2[%c0, %c0_0, %c0_1] : memref<1x2x256xbf16, #tpu.memory_space<vmem>>, vector<1x2x256xbf16>
    %1 = vector.shape_cast %0 : vector<1x2x256xbf16> to vector<2x256xbf16>
    %c0_2 = arith.constant 0 : index
    %c0_3 = arith.constant 0 : index
    %c0_4 = arith.constant 0 : index
    %2 = vector.load %arg3[%c0_2, %c0_3, %c0_4] : memref<1x256x128xbf16, #tpu.memory_space<vmem>>, vector<1x256x128xbf16>
    %3 = vector.shape_cast %2 : vector<1x256x128xbf16> to vector<256x128xbf16>
    %cst = arith.constant dense<0.000000e+00> : vector<2x128xf32>
    %4 = tpu.matmul %1, %3, %cst {dimension_numbers = #tpu.dot_dimension_numbers<[1], [0], [0], [1], [0, 0, 1, 1], [], []>} : vector<2x256xbf16>, vector<256x128xbf16>, vector<2x128xf32> -> vector<2x128xf32>
    %c0_5 = arith.constant 0 : index
    %c0_6 = arith.constant 0 : index
    %c0_7 = arith.constant 0 : index
    %5 = vector.load %arg4[%c0_5, %c0_6, %c0_7] : memref<1x2x128xf32, #tpu.memory_space<vmem>>, vector<1x2x128xf32>
    %6 = vector.shape_cast %5 : vector<1x2x128xf32> to vector<2x128xf32>
    %7 = vector.shape_cast %4 : vector<2x128xf32> to vector<1x2x128xf32>
    tpu.vector_store %arg4[%c0_5, %c0_6, %c0_7], %7 {strides = array<i32>} : memref<1x2x128xf32, #tpu.memory_space<vmem>>, vector<1x2x128xf32>,
    return
  }
  func.func @transform_0(%arg0: i32, %arg1: i32) -> (i32, i32, i32) {
    %c0_i32 = arith.constant 0 : i32
    %c0_i32_0 = arith.constant 0 : i32
    return %arg0, %arg1, %c0_i32 : i32, i32, i32
  }
  func.func @transform_1(%arg0: i32, %arg1: i32) -> (i32, i32, i32) {
    %c0_i32 = arith.constant 0 : i32
    %c0_i32_0 = arith.constant 0 : i32
    %c0_i32_1 = arith.constant 0 : i32
    return %arg0, %c0_i32, %c0_i32_0 : i32, i32, i32
  }
  func.func @transform_2(%arg0: i32, %arg1: i32) -> (i32, i32, i32) {
    %c0_i32 = arith.constant 0 : i32
    %c0_i32_0 = arith.constant 0 : i32
    return %arg0, %arg1, %c0_i32 : i32, i32, i32
  }
}

</mosaic_0001>

<llo_original>
// kernel: lora_m_matmul_fused.1
$region0: #{lora_m_matmul_fused.1}
  #allocation0 [shape = 'u32[]', space=smem, size = 0x4, offset = 0x4, fixed_abs, tag = 'smem constant byte address 0x4 - core index']
  #allocation1 [shape = 'u32[144,128]{1,0:T(1,128)}', space=vmem, size = 0x12000, scoped, tag = 'internal scratch']
  %s0 = inlined_call_operand.vmem [shape: bf16[2,2,256], index: 0, kind: input, shape index: {}]
  %s1 = inlined_call_operand.hbm [shape: bf16[2,256,128], index: 1, kind: input, shape index: {}]
  %s2 = inlined_call_operand.vmem [shape: f32[2,2,128], index: 2, kind: output, shape index: {}]
  %s3 = sld [smem:[#allocation0]]
  $region45: #{lora_m_matmul_fused.1} parent=0
    _
  %s5 = ssub.s32 1, %s3
  %s6 = scalar_select 0, %s5, %s3
  $region1: #{lora_m_matmul_fused.1} parent=0
    #allocation2 [shape = 'u8[131072]{0}', space=vmem, size = 0x20000, scoped, tag = 'input window, operand 1']
    #allocation3 [shape = 's32[2]{0}', space=sflag, size = 0x8, scoped, tag = 'scoped memory for lora_m_matmul_fused.1']
    %7 = vsyncpa [#allocation3], 0
    %s8 = scalar_lea.sflag [#allocation3], 1
    %9 = vsyncpa %s8, 0
    loop: start=0, step=1, limit=4
    $region2: #{lora_m_matmul_fused.1} parent=1 // loop_pre_header
      _
    $region3: #{lora_m_matmul_fused.1} parent=1 // loop_header
      %s11 = sphi 0, %s15
      %p12 = scmp.ge.s32.totalorder %s11, 4
      %s18 = sphi 0, %s30
      %s19 = sphi 0, %s26
      %s20 = sphi 0, %s18
      %s21 = sphi 0, %s19
      %s22 = sphi 0, %s20
      %s23 = sphi 0, %s21
      %s35 = sphi 0, %s37
      %s38 = sphi 0, %s35
      %s39 = sphi 0, %s38
      %s55 = sphi 0, %s39
      %s61 = sphi 0, %s63
      %s64 = sphi 0, %s61
      %s65 = sphi 0, %s64
      %s81 = sphi 0, %s65
      %s89 = sphi 0, %s91
      %s92 = sphi 0, %s89
      %s93 = sphi 0, %s92
      %s109 = sphi 0, %s93
    $region4: #{lora_m_matmul_fused.1} parent=1 // loop_header_branch
      %14 = sbr.rel (%p12) target = $region8
    $region5: #{lora_m_matmul_fused.1} parent=1 // loop_body
      %s16 = ssub.s32 %s11, 1
      %s17 = ssub.s32 %s11, 2
      %s24 = sadd.s32 1, %s19
      %p25 = scmp.ge.s32.totalorder %s24, 1
      %s26 = scalar_select %p25, 0, %s24
      %s27 = sadd.s32 1, %s18
      %s28 = scalar_select %p25, %s27, %s18
      %p29 = scmp.ge.s32.totalorder %s28, 2
      %s30 = scalar_select %p29, 0, %s28
      %s31 = ssub.s32 %s18, %s30
      %s32 = ssub.s32 %s19, %s26
      %s33 = sor.u32 %s31, %s32
      %p34 = scmp.eq.s32.totalorder %s33, 0
      %s36 = sadd.s32 %s35, 1
      %s37 = scalar_select %p34, %s35, %s36
      %p40 = pneg %p34
      %p41 = scmp.eq.s32.totalorder %s11, 1
      %p42 = por %p40, %p41
      %p43 = scmp.ne.s32.totalorder %s35, %s38
      %p44 = scmp.eq.s32.totalorder %s11, 0
      %p45 = por %p43, %p44
      %p46 = scmp.ne.s32.totalorder %s35, %s38
      %p47 = scmp.eq.s32.totalorder %s16, 1
      %p48 = por %p46, %p47
      %p49 = scmp.ne.s32.totalorder %s38, %s39
      %p50 = scmp.eq.s32.totalorder %s16, 0
      %p51 = por %p49, %p50
      %p52 = scmp.ne.s32.totalorder %s38, %s39
      %p53 = scmp.eq.s32.totalorder %s17, 1
      %p54 = por %p52, %p53
      %p56 = scmp.ne.s32.totalorder %s39, %s55
      %p57 = scmp.eq.s32.totalorder %s17, 0
      %p58 = por %p56, %p57
      %s59 = ssub.s32 %s18, %s30
      %p60 = scmp.eq.s32.totalorder %s59, 0
      %s62 = sadd.s32 %s61, 1
      %s63 = scalar_select %p60, %s61, %s62
      %p66 = pneg %p60
      %p67 = scmp.eq.s32.totalorder %s11, 1
      %p68 = por %p66, %p67
      %p69 = scmp.ne.s32.totalorder %s61, %s64
      %p70 = scmp.eq.s32.totalorder %s11, 0
      %p71 = por %p69, %p70
      %p72 = scmp.ne.s32.totalorder %s61, %s64
      %p73 = scmp.eq.s32.totalorder %s16, 1
      %p74 = por %p72, %p73
      %p75 = scmp.ne.s32.totalorder %s64, %s65
      %p76 = scmp.eq.s32.totalorder %s16, 0
      %p77 = por %p75, %p76
      %p78 = scmp.ne.s32.totalorder %s64, %s65
      %p79 = scmp.eq.s32.totalorder %s17, 1
      %p80 = por %p78, %p79
      %p82 = scmp.ne.s32.totalorder %s65, %s81
      %p83 = scmp.eq.s32.totalorder %s17, 0
      %p84 = por %p82, %p83
      %s85 = ssub.s32 %s18, %s30
      %s86 = ssub.s32 %s19, %s26
      %s87 = sor.u32 %s85, %s86
      %p88 = scmp.eq.s32.totalorder %s87, 0
      %s90 = sadd.s32 %s89, 1
      %s91 = scalar_select %p88, %s89, %s90
      %p94 = pneg %p88
      %p95 = scmp.eq.s32.totalorder %s11, 1
      %p96 = por %p94, %p95
      %p97 = scmp.ne.s32.totalorder %s89, %s92
      %p98 = scmp.eq.s32.totalorder %s11, 0
      %p99 = por %p97, %p98
      %p100 = scmp.ne.s32.totalorder %s89, %s92
      %p101 = scmp.eq.s32.totalorder %s16, 1
      %p102 = por %p100, %p101
      %p103 = scmp.ne.s32.totalorder %s92, %s93
      %p104 = scmp.eq.s32.totalorder %s16, 0
      %p105 = por %p103, %p104
      %p106 = scmp.ne.s32.totalorder %s92, %s93
      %p107 = scmp.eq.s32.totalorder %s17, 1
      %p108 = por %p106, %p107
      %p110 = scmp.ne.s32.totalorder %s93, %s109
      %p111 = scmp.eq.s32.totalorder %s17, 0
      %p112 = por %p110, %p111
      %p113 = scmp.le.s32.totalorder 1, %s11
      %p114 = scmp.lt.s32.totalorder %s11, 3
      %p115 = pnand %p113, %p114
      %p116 = pneg %p115
      // Predicated region
      $region9: #{lora_m_matmul_fused.1} parent=5 // pred_check
        _
      $region10: #{lora_m_matmul_fused.1} parent=5 // pred_check_branch
        %118 = sbr.rel (%p115) target = $region12
      $region11: #{lora_m_matmul_fused.1} parent=5 // pred_region
        %s119 = ssub.s32 %s11, 1
      $region12: #{lora_m_matmul_fused.1} parent=5 // pred_fallthru
        _
      %p120 = scmp.lt.s32.totalorder %s11, 2
      // Predicated region
      $region13: #{lora_m_matmul_fused.1} parent=5 // pred_check
        %p121 = pneg %p120
      $region14: #{lora_m_matmul_fused.1} parent=5 // pred_check_branch
        %123 = sbr.rel (%p121) target = $region16
      $region15: #{lora_m_matmul_fused.1} parent=5 // pred_region
        // Predicated region
        $region17: #{lora_m_matmul_fused.1} parent=15 // pred_check
          %p124 = pneg %p45
        $region18: #{lora_m_matmul_fused.1} parent=15 // pred_check_branch
          %126 = sbr.rel (%p124) target = $region20
        $region19: #{lora_m_matmul_fused.1} parent=15 // pred_region
          %p127 = scmp.lt.s32.totalorder %s18, 1
          %s128 = scalar_select %p127, %s18, 1
          %p129 = scmp.lt.s32.totalorder %s19, 0
          %s130 = scalar_select %p129, %s19, 0
          %s131 = smul.addr %s130, 2
          %s132 = smul.addr %s128, 2
          %s133 = sadd.s32 %s131, %s132
          %s134 = scalar_lea.vmem %s0, %s133
        $region20: #{lora_m_matmul_fused.1} parent=15 // pred_fallthru
          _
        // Predicated region
        $region21: #{lora_m_matmul_fused.1} parent=15 // pred_check
          %p135 = pneg %p71
        $region22: #{lora_m_matmul_fused.1} parent=15 // pred_check_branch
          %137 = sbr.rel (%p135) target = $region24
        $region23: #{lora_m_matmul_fused.1} parent=15 // pred_region
          %s138 = sand.u32 %s61, 1
          %s139 = scalar_lea.sflag [#allocation3], %s138
          %s140 = sand.u32 %s61, 1
          %s141 = smul.addr %s140, 128
          %s142 = scalar_lea.vmem [#allocation2], %s141
          %s144 = ssub.s32 2048, 2048
          %145 = vsyncadd %s139, %s144
          %s146 = smul.addr %s18, 32
          %s147 = smul.addr %s146, 64
          %s148 = scalar_lea.hbm %s1, %s147
          %s149 = sshll.u32 %s142, 4
          %s150 = int_to_ptr.vmem [resolvable:$true] %s149
          %155 = dma.hbm_to_vmem [thread:$0]  %s148, 2048, %s150, %s139, 64, 64, 4
        $region24: #{lora_m_matmul_fused.1} parent=15 // pred_fallthru
          _
      $region16: #{lora_m_matmul_fused.1} parent=5 // pred_fallthru
        _
      %p156 = scmp.le.s32.totalorder 1, %s11
      %p157 = scmp.lt.s32.totalorder %s11, 3
      %p158 = pnand %p156, %p157
      %p159 = pneg %p158
      // Predicated region
      $region25: #{lora_m_matmul_fused.1} parent=5 // pred_check
        _
      $region26: #{lora_m_matmul_fused.1} parent=5 // pred_check_branch
        %161 = sbr.rel (%p158) target = $region28
      $region27: #{lora_m_matmul_fused.1} parent=5 // pred_region
        %s162 = ssub.s32 %s11, 1
        %s163 = sand.u32 %s64, 1
        %s164 = scalar_lea.sflag [#allocation3], %s163
        %s165 = sand.u32 %s64, 1
        %s166 = smul.addr %s165, 128
        %s167 = scalar_lea.vmem [#allocation2], %s166
        // Predicated region
        $region29: #{lora_m_matmul_fused.1} parent=27 // pred_check
          %p168 = pneg %p77
        $region30: #{lora_m_matmul_fused.1} parent=27 // pred_check_branch
          %170 = sbr.rel (%p168) target = $region32
        $region31: #{lora_m_matmul_fused.1} parent=27 // pred_region
          %171 = dma.done %s164, 2048
        $region32: #{lora_m_matmul_fused.1} parent=27 // pred_fallthru
          _
        %p172 = scmp.lt.s32.totalorder %s20, 1
        %s173 = scalar_select %p172, %s20, 1
        %p174 = scmp.lt.s32.totalorder %s21, 0
        %s175 = scalar_select %p174, %s21, 0
        %s176 = smul.addr %s175, 2
        %s177 = smul.addr %s173, 2
        %s178 = sadd.s32 %s176, %s177
        %s179 = scalar_lea.vmem %s0, %s178
        %p180 = pneg %p51
        %p181 = pneg %p48
        %s182 = sand.u32 %s64, 1
        %s183 = scalar_lea.sflag [#allocation3], %s182
        %s184 = sand.u32 %s64, 1
        %s185 = smul.addr %s184, 128
        %s186 = scalar_lea.vmem [#allocation2], %s185
        %p187 = pneg %p77
        %p188 = pneg %p74
        %p189 = pneg %p105
        %p190 = pneg %p102
        %p191 = scmp.lt.s32.totalorder %s20, 1
        %s192 = scalar_select %p191, %s20, 1
        %p193 = scmp.lt.s32.totalorder %s21, 0
        %s194 = scalar_select %p193, %s21, 0
        %s195 = sadd.s32 %s194, %s192
        %s196 = smul.addr %s195, 2
        %s197 = scalar_lea.vmem %s2, %s196
        %p198 = scmp.lt.s32.totalorder %s20, 1
        %s199 = scalar_select %p198, %s20, 1
        %p200 = scmp.lt.s32.totalorder %s21, 0
        %s201 = scalar_select %p200, %s21, 0
        %s202 = smul.addr %s201, 2
        %s203 = smul.addr %s199, 2
        %s204 = sadd.s32 %s202, %s203
        %s205 = scalar_lea.vmem %s0, %s204
        %p206 = scmp.lt.s32.totalorder %s20, 1
        %s207 = scalar_select %p206, %s20, 1
        %p208 = scmp.lt.s32.totalorder %s21, 0
        %s209 = scalar_select %p208, %s21, 0
        %s210 = sadd.s32 %s209, %s207
        %s211 = smul.addr %s210, 2
        %s212 = scalar_lea.vmem %s2, %s211
        %v214 = vld [vmem:[%s205] sm:$0x3]
        %v215 = vld [vmem:[%s167] sm:$0xf]
        %v216 = vld [vmem:[%s167 + $0x4] sm:$0xf]
        %v217 = vld [vmem:[%s167 + $0x8] sm:$0xf]
        %v218 = vld [vmem:[%s167 + $0xc] sm:$0xf]
        %v219 = vld [vmem:[%s167 + $0x10] sm:$0xf]
        %v220 = vld [vmem:[%s167 + $0x14] sm:$0xf]
        %v221 = vld [vmem:[%s167 + $0x18] sm:$0xf]
        %v222 = vld [vmem:[%s167 + $0x1c] sm:$0xf]
        %v223 = vld [vmem:[%s167 + $0x20] sm:$0xf]
        %v224 = vld [vmem:[%s167 + $0x24] sm:$0xf]
        %v225 = vld [vmem:[%s167 + $0x28] sm:$0xf]
        %v226 = vld [vmem:[%s167 + $0x2c] sm:$0xf]
        %v227 = vld [vmem:[%s167 + $0x30] sm:$0xf]
        %v228 = vld [vmem:[%s167 + $0x34] sm:$0xf]
        %v229 = vld [vmem:[%s167 + $0x38] sm:$0xf]
        %v230 = vld [vmem:[%s167 + $0x3c] sm:$0xf]
        %v231 = vld [vmem:[%s167 + $0x40] sm:$0xf]
        %v232 = vld [vmem:[%s167 + $0x44] sm:$0xf]
        %v233 = vld [vmem:[%s167 + $0x48] sm:$0xf]
        %v234 = vld [vmem:[%s167 + $0x4c] sm:$0xf]
        %v235 = vld [vmem:[%s167 + $0x50] sm:$0xf]
        %v236 = vld [vmem:[%s167 + $0x54] sm:$0xf]
        %v237 = vld [vmem:[%s167 + $0x58] sm:$0xf]
        %v238 = vld [vmem:[%s167 + $0x5c] sm:$0xf]
        %v239 = vld [vmem:[%s167 + $0x60] sm:$0xf]
        %v240 = vld [vmem:[%s167 + $0x64] sm:$0xf]
        %v241 = vld [vmem:[%s167 + $0x68] sm:$0xf]
        %v242 = vld [vmem:[%s167 + $0x6c] sm:$0xf]
        %v243 = vld [vmem:[%s167 + $0x70] sm:$0xf]
        %v244 = vld [vmem:[%s167 + $0x74] sm:$0xf]
        %v245 = vld [vmem:[%s167 + $0x78] sm:$0xf]
        %v246 = vld [vmem:[%s167 + $0x7c] sm:$0xf]
        %v249 = vunpack.c.l.s4 1966171168
        %v250 = vunpack.c.0.s8 %v249
        %v251 = vlaneseq
        %v252 = vshrl.u32 %v251, 7
        %v253 = vsub.s32 %v250, %v252
        %v254 = vrot.slane %v214, %v253
        %v255 = vcombine.high %v254, %v254
        %v257 = vunpack.c.l.s4 1966171168
        %v258 = vunpack.c.0.s8 %v257
        %v259 = vlaneseq
        %v260 = vshrl.u32 %v259, 7
        %v261 = vsub.s32 %v258, %v260
        %v262 = vrot.slane %v254, %v261
        %v264 = vunpack.c.l.s4 1966171168
        %v265 = vunpack.c.0.s8 %v264
        %v266 = vlaneseq
        %v267 = vshrl.u32 %v266, 7
        %v268 = vsub.s32 %v265, %v267
        %v269 = vrot.slane %v255, %v268
        %v304 = vunpack.c.l.b16 %v215
        %v305 = vunpack.c.l.b16 %v216
        %v306 = vunpack.c.l.b16 %v217
        %v307 = vunpack.c.l.b16 %v218
        %v308 = vunpack.c.l.b16 %v219
        %v309 = vunpack.c.l.b16 %v220
        %v310 = vunpack.c.l.b16 %v221
        %v311 = vunpack.c.l.b16 %v222
        %v312 = vunpack.c.l.b16 %v223
        %v313 = vunpack.c.l.b16 %v224
        %v314 = vunpack.c.l.b16 %v225
        %v315 = vunpack.c.l.b16 %v226
        %v316 = vunpack.c.l.b16 %v227
        %v317 = vunpack.c.l.b16 %v228
        %v318 = vunpack.c.l.b16 %v229
        %v319 = vunpack.c.l.b16 %v230
        %v320 = vunpack.c.l.b16 %v231
        %v321 = vunpack.c.l.b16 %v232
        %v322 = vunpack.c.l.b16 %v233
        %v323 = vunpack.c.l.b16 %v234
        %v324 = vunpack.c.l.b16 %v235
        %v325 = vunpack.c.l.b16 %v236
        %v326 = vunpack.c.l.b16 %v237
        %v327 = vunpack.c.l.b16 %v238
        %v328 = vunpack.c.l.b16 %v239
        %v329 = vunpack.c.l.b16 %v240
        %v330 = vunpack.c.l.b16 %v241
        %v331 = vunpack.c.l.b16 %v242
        %v332 = vunpack.c.l.b16 %v243
        %v333 = vunpack.c.l.b16 %v244
        %v334 = vunpack.c.l.b16 %v245
        %v335 = vunpack.c.l.b16 %v246
        %v336 = vpack.c.b16 %v305, %v304
        %v337 = vpack.c.b16 %v307, %v306
        %v338 = vpack.c.b16 %v309, %v308
        %v339 = vpack.c.b16 %v311, %v310
        %v340 = vpack.c.b16 %v313, %v312
        %v341 = vpack.c.b16 %v315, %v314
        %v342 = vpack.c.b16 %v317, %v316
        %v343 = vpack.c.b16 %v319, %v318
        %v344 = vpack.c.b16 %v321, %v320
        %v345 = vpack.c.b16 %v323, %v322
        %v346 = vpack.c.b16 %v325, %v324
        %v347 = vpack.c.b16 %v327, %v326
        %v348 = vpack.c.b16 %v329, %v328
        %v349 = vpack.c.b16 %v331, %v330
        %v350 = vpack.c.b16 %v333, %v332
        %v351 = vpack.c.b16 %v335, %v334
        %368 = vmatprep.subr.bf16.mxu0 0
        %369 = vmatpush1.bf16.msra.mxu0 %v336
        %370 = vmatprep.subr.bf16.mxu0 0
        %371 = vmatpush1.bf16.msra.mxu0 %v337
        %372 = vmatprep.subr.bf16.mxu0 0
        %373 = vmatpush1.bf16.msra.mxu0 %v338
        %374 = vmatprep.subr.bf16.mxu0 0
        %375 = vmatpush1.bf16.msra.mxu0 %v339
        %376 = vmatprep.subr.bf16.mxu0 0
        %377 = vmatpush1.bf16.msra.mxu0 %v340
        %378 = vmatprep.subr.bf16.mxu0 0
        %379 = vmatpush1.bf16.msra.mxu0 %v341
        %380 = vmatprep.subr.bf16.mxu0 0
        %381 = vmatpush1.bf16.msra.mxu0 %v342
        %382 = vmatprep.subr.bf16.mxu0 0
        %383 = vmatpush1.bf16.msra.mxu0 %v343
        %384 = vmatprep.subr.bf16.mxu0 0
        %385 = vmatpush1.bf16.msra.mxu0 %v344
        %386 = vmatprep.subr.bf16.mxu0 0
        %387 = vmatpush1.bf16.msra.mxu0 %v345
        %388 = vmatprep.subr.bf16.mxu0 0
        %389 = vmatpush1.bf16.msra.mxu0 %v346
        %390 = vmatprep.subr.bf16.mxu0 0
        %391 = vmatpush1.bf16.msra.mxu0 %v347
        %392 = vmatprep.subr.bf16.mxu0 0
        %393 = vmatpush1.bf16.msra.mxu0 %v348
        %394 = vmatprep.subr.bf16.mxu0 0
        %395 = vmatpush1.bf16.msra.mxu0 %v349
        %396 = vmatprep.subr.bf16.mxu0 0
        %397 = vmatpush1.bf16.msra.mxu0 %v350
        %398 = vmatprep.subr.bf16.mxu0 0
        %399 = vmatpush1.bf16.msra.mxu0 %v351
        %400 = vmatprep.mubr.bf16.mxu0 %v269
        %401 = vmatmul.mubr.bf16.gmra.mrb[0].mxu0 %v262
        %v402 = vpop.f32.mrb[0].mxu0
        %v403 = vadd.f32 0.0, %v402
        %v404 = vpop.f32.mrb[0].mxu0
        %v405 = vpop.f32.mrb[0].mxu0
        %v406 = vpop.f32.mrb[0].mxu0
        %407 = vdwg.mxu0
        %408 = vst [vmem:[%s212] sm:$0x3] %v403
        %p409 = scmp.lt.s32.totalorder %s20, 1
        %s410 = scalar_select %p409, %s20, 1
        %p411 = scmp.lt.s32.totalorder %s21, 0
        %s412 = scalar_select %p411, %s21, 0
        %s413 = sadd.s32 %s412, %s410
        %s414 = smul.addr %s413, 2
        %s415 = scalar_lea.vmem %s2, %s414
        // Predicated region
        $region33: #{lora_m_matmul_fused.1} parent=27 // pred_check
          %p416 = pneg %p102
        $region34: #{lora_m_matmul_fused.1} parent=27 // pred_check_branch
          %418 = sbr.rel (%p416) target = $region36
        $region35: #{lora_m_matmul_fused.1} parent=27 // pred_region
          _
        $region36: #{lora_m_matmul_fused.1} parent=27 // pred_fallthru
          _
      $region28: #{lora_m_matmul_fused.1} parent=5 // pred_fallthru
        _
      %p419 = scmp.le.s32.totalorder 2, %s11
      // Predicated region
      $region37: #{lora_m_matmul_fused.1} parent=5 // pred_check
        %p420 = pneg %p419
      $region38: #{lora_m_matmul_fused.1} parent=5 // pred_check_branch
        %422 = sbr.rel (%p420) target = $region40
      $region39: #{lora_m_matmul_fused.1} parent=5 // pred_region
        %s423 = ssub.s32 %s11, 2
        // Predicated region
        $region41: #{lora_m_matmul_fused.1} parent=39 // pred_check
          %p424 = pneg %p108
        $region42: #{lora_m_matmul_fused.1} parent=39 // pred_check_branch
          %426 = sbr.rel (%p424) target = $region44
        $region43: #{lora_m_matmul_fused.1} parent=39 // pred_region
          %p427 = scmp.lt.s32.totalorder %s22, 1
          %s428 = scalar_select %p427, %s22, 1
          %p429 = scmp.lt.s32.totalorder %s23, 0
          %s430 = scalar_select %p429, %s23, 0
          %s431 = sadd.s32 %s430, %s428
          %s432 = smul.addr %s431, 2
          %s433 = scalar_lea.vmem %s2, %s432
        $region44: #{lora_m_matmul_fused.1} parent=39 // pred_fallthru
          _
      $region40: #{lora_m_matmul_fused.1} parent=5 // pred_fallthru
        _
    $region6: #{lora_m_matmul_fused.1} parent=1 // loop_footer
      %s15 = sadd.s32 1, %s11
    $region7: #{lora_m_matmul_fused.1} parent=1 // loop_footer_branch
      %10 = sbr.rel target = $region3
    $region8: #{lora_m_matmul_fused.1} parent=1 // loop_exit
      _
    %434 = vsyncpa [#allocation3], 1
    %s435 = scalar_lea.sflag [#allocation3], 1
    %436 = vsyncpa %s435, 1

</llo_original>
